<compile_context>
chip_gen: v7x
topology: tpu7x:2x2x1
jax: 0.10.0
libtpu: 0.0.40
codegen_flags: <defaults>
</compile_context>

<pallas_src>
import functools

import jax
import jax.numpy as jnp
from jax import lax
from jax.experimental import pallas as pl
from jax.experimental.pallas import tpu as pltpu

SEQ_LEN = 1600        # must be a multiple of 400 (conv1 kernel/stride)
N_CLASSES = 6
FCHID = 30            # fchid = fcout = convin = 30 in the torch module
K1 = 400              # conv1 kernel_size == stride
K3 = 75               # conv3 kernel_size
PAD3 = 37             # conv3 padding
BN_EPS = 1e-5


def _vanilla_convnet_kernel(xw_ref, w1_ref, b1_ref, g_ref, be_ref,
                            w2_ref, b2_ref, sel_ref, w3r_ref, b3_ref,
                            out_ref, *, B, L, NC):
    """Whole forward pass on channel-last rows (B*L, .); one grid-less invocation."""
    # ---- conv1 (k = stride = 400): one MXU matmul over non-overlapping windows ----
    h1 = jnp.dot(xw_ref[...], w1_ref[...],
                 preferred_element_type=jnp.float32) + b1_ref[...]        # (B*L, C)

    # ---- BatchNorm1d(30), training-mode batch stats, fused single pass ----
    inv_n = jnp.float32(1.0 / (B * L))
    s1 = jnp.sum(h1, axis=0, keepdims=True)                               # (1, C)
    s2 = jnp.sum(h1 * h1, axis=0, keepdims=True)                          # (1, C)
    mean = s1 * inv_n
    var = s2 * inv_n - mean * mean                                        # biased variance
    scale = lax.rsqrt(var + BN_EPS) * g_ref[...]
    shift = be_ref[...] - mean * scale
    h1 = jnp.maximum(h1 * scale + shift, 0.0)                             # BN + ReLU

    # ---- conv2 (1x1): one MXU matmul + ReLU ----
    h2 = jnp.dot(h1, w2_ref[...], preferred_element_type=jnp.float32) + b2_ref[...]
    h2 = jnp.maximum(h2, 0.0)                                             # (B*L, C)

    # ---- conv3 (k=75, pad=37) as a dense per-batch contraction (block-Toeplitz taps) ----
    # sel_ref[s] : (B, B*L) 0/1 gather of row b*L+s for every batch element.
    # w3r_ref[s] : (C, L*NC) taps w3[o, c, 37+s-t], zero-masked outside [0, K3).
    acc = jnp.zeros((B, L * NC), jnp.float32)
    for s in range(L):                       # tiny static trip count (L = 4)
        g = jnp.dot(sel_ref[s], h2, preferred_element_type=jnp.float32)   # (B, C)
        acc = acc + jnp.dot(g, w3r_ref[s], preferred_element_type=jnp.float32)
    out_ref[...] = acc + b3_ref[...]                                      # (B, L*NC)


def vanilla_convnet_forward(x, params):
    """x: (B, seq_len) float32 -> (B, seq_len, n_classes) float32."""
    B, S = x.shape
    assert S % K1 == 0, "seq_len must be a multiple of 400"
    L = S // K1
    C = FCHID
    NC = params["w3"].shape[0]

    # ---- layout glue: conv1 windows + torch->matmul weight transposes ----
    xw = x.reshape(B * L, K1).astype(jnp.float32)
    w1_t = jnp.transpose(params["w1"][:, 0, :])                           # (K1, C)
    w2_t = jnp.transpose(params["w2"][:, :, 0])                           # (C, C)
    b1 = params["b1"].reshape(1, C)
    b2 = params["b2"].reshape(1, C)
    gamma = params["gamma"].reshape(1, C)
    beta = params["beta"].reshape(1, C)
    b3t = jnp.tile(params["b3"].reshape(1, NC), (1, L))                   # (1, L*NC)

    # Block-Toeplitz conv3 taps: w3rows[s, c, t*NC + o] = w3[o, c, 37 + s - t],
    # zero-masked when 37 + s - t falls outside [0, K3) -> exact for any L.
    w3_t = jnp.transpose(params["w3"], (2, 1, 0))                         # (K3, C, NC)
    k = PAD3 + jnp.arange(L)[:, None] - jnp.arange(L)[None, :]            # (L, L)
    valid = ((k >= 0) & (k < K3)).astype(jnp.float32)
    blocks = w3_t[jnp.clip(k, 0, K3 - 1)] * valid[..., None, None]        # (L, L, C, NC)
    w3rows = jnp.transpose(blocks, (0, 2, 1, 3)).reshape(L, C, L * NC)    # (L, C, L*NC)

    # 0/1 selector: sel[s, b, r] = 1  iff  r == b*L + s  (row gather by matmul,
    # avoids any in-kernel reshape of the (B*L, C) activation into (B, L*C)).
    r = jnp.arange(B * L)[None, None, :]
    sel = (r == (jnp.arange(B)[None, :, None] * L
                 + jnp.arange(L)[:, None, None])).astype(jnp.float32)     # (L, B, B*L)

    kernel = functools.partial(_vanilla_convnet_kernel, B=B, L=L, NC=NC)
    vmem = pl.BlockSpec(memory_space=pltpu.MemorySpace.VMEM)
    out = pl.pallas_call(
        kernel,
        out_shape=jax.ShapeDtypeStruct((B, L * NC), jnp.float32),
        in_specs=[vmem] * 10,
        out_specs=vmem,
    )(xw, w1_t, b1, gamma, beta, w2_t, b2, sel, w3rows, b3t)

    # ---- glue: nearest interpolate (exact 400x repeat) + permute(0, 2, 1) ----
    out = out.reshape(B, L, NC)
    out = jnp.repeat(out, S // L, axis=1)                                 # (B, S, NC)
    return out


def init_params(key, n_classes=N_CLASSES):
    """Deterministic synthetic parameters with torch Conv1d weight layouts."""
    ks = jax.random.split(key, 8)
    return dict(
        w1=jax.random.normal(ks[0], (FCHID, 1, K1), jnp.float32) / jnp.sqrt(K1),
        b1=0.1 * jax.random.normal(ks[1], (FCHID,), jnp.float32),
        w2=jax.random.normal(ks[2], (FCHID, FCHID, 1), jnp.float32) / jnp.sqrt(FCHID),
        b2=0.1 * jax.random.normal(ks[3], (FCHID,), jnp.float32),
        w3=jax.random.normal(ks[4], (n_classes, FCHID, K3), jnp.float32)
        / jnp.sqrt(K3 * FCHID),
        b3=0.1 * jax.random.normal(ks[5], (n_classes,), jnp.float32),
        gamma=1.0 + 0.1 * jax.random.normal(ks[6], (FCHID,), jnp.float32),
        beta=0.1 * jax.random.normal(ks[7], (FCHID,), jnp.float32),
    )


def reference_forward(x, params):
    """Pure-JAX reference mirroring the torch forward (pos_emb=None, BN training mode)."""
    B, S = x.shape
    dn = ('NCH', 'OIH', 'NCH')
    h = x[:, None, :].astype(jnp.float32)
    h1 = lax.conv_general_dilated(h, params["w1"], (K1,), 'VALID',
                                  dimension_numbers=dn) + params["b1"][None, :, None]
    mean = jnp.mean(h1, axis=(0, 2), keepdims=True)
    var = jnp.mean((h1 - mean) ** 2, axis=(0, 2), keepdims=True)
    h1 = (h1 - mean) * lax.rsqrt(var + BN_EPS)
    h1 = h1 * params["gamma"][None, :, None] + params["beta"][None, :, None]
    h1 = jnp.maximum(h1, 0.0)
    h2 = lax.conv_general_dilated(h1, params["w2"], (1,), 'VALID',
                                  dimension_numbers=dn) + params["b2"][None, :, None]
    h2 = jnp.maximum(h2, 0.0)
    h3 = lax.conv_general_dilated(h2, params["w3"], (1,), [(PAD3, PAD3)],
                                  dimension_numbers=dn) + params["b3"][None, :, None]
    up = jnp.repeat(h3, S // h3.shape[-1], axis=-1)                       # nearest interpolate
    return jnp.transpose(up, (0, 2, 1))


if __name__ == "__main__":
    key = jax.random.PRNGKey(0)
    kx, kp = jax.random.split(key)
    B = 2
    x = jax.random.normal(kx, (B, SEQ_LEN), jnp.float32)
    params = init_params(kp)

    out = jax.block_until_ready(vanilla_convnet_forward(x, params))
    ref = jax.block_until_ready(reference_forward(x, params))

    assert out.shape == (B, SEQ_LEN, N_CLASSES), out.shape
    max_err = float(jnp.max(jnp.abs(out - ref)))
    assert max_err < 1e-3, f"max abs err {max_err}"
    print("KERNEL_OK")
</pallas_src>

<mosaic_0001>
module attributes {stable_mosaic.version = 11 : i64} {
  func.func @_vanilla_convnet_kernel(%arg0: memref<8x400xf32, #tpu.memory_space<vmem>>, %arg1: memref<400x30xf32, #tpu.memory_space<vmem>>, %arg2: memref<1x30xf32, #tpu.memory_space<vmem>>, %arg3: memref<1x30xf32, #tpu.memory_space<vmem>>, %arg4: memref<1x30xf32, #tpu.memory_space<vmem>>, %arg5: memref<30x30xf32, #tpu.memory_space<vmem>>, %arg6: memref<1x30xf32, #tpu.memory_space<vmem>>, %arg7: memref<4x2x8xf32, #tpu.memory_space<vmem>>, %arg8: memref<4x30x24xf32, #tpu.memory_space<vmem>>, %arg9: memref<1x24xf32, #tpu.memory_space<vmem>>, %arg10: memref<2x24xf32, #tpu.memory_space<vmem>>) attributes {dimension_semantics = [], scalar_prefetch = 0 : i64, scratch_operands = 0 : i64, tpu.core_type = #tpu.core_type<tc>} {
    %c0 = arith.constant 0 : index
    %c0_0 = arith.constant 0 : index
    %0 = vector.load %arg0[%c0, %c0_0] : memref<8x400xf32, #tpu.memory_space<vmem>>, vector<8x400xf32>
    %c0_1 = arith.constant 0 : index
    %c0_2 = arith.constant 0 : index
    %1 = vector.load %arg1[%c0_1, %c0_2] : memref<400x30xf32, #tpu.memory_space<vmem>>, vector<400x30xf32>
    %cst = arith.constant dense<0.000000e+00> : vector<8x30xf32>
    %2 = tpu.matmul %0, %1, %cst {dimension_numbers = #tpu.dot_dimension_numbers<[1], [0], [0], [1], [0, 0, 1, 1], [], []>} : vector<8x400xf32>, vector<400x30xf32>, vector<8x30xf32> -> vector<8x30xf32>
    %c0_3 = arith.constant 0 : index
    %c0_4 = arith.constant 0 : index
    %3 = vector.load %arg2[%c0_3, %c0_4] : memref<1x30xf32, #tpu.memory_space<vmem>>, vector<1x30xf32>
    %4 = vector.broadcast %3 : vector<1x30xf32> to vector<8x30xf32>
    %5 = arith.addf %2, %4 : vector<8x30xf32>
    %cst_5 = arith.constant dense<0.000000e+00> : vector<30xf32>
    %6 = vector.multi_reduction <add>, %5, %cst_5 [0] : vector<8x30xf32> to vector<30xf32>
    %7 = vector.shape_cast %6 : vector<30xf32> to vector<1x30xf32>
    %8 = arith.mulf %5, %5 : vector<8x30xf32>
    %cst_6 = arith.constant dense<0.000000e+00> : vector<30xf32>
    %9 = vector.multi_reduction <add>, %8, %cst_6 [0] : vector<8x30xf32> to vector<30xf32>
    %10 = vector.shape_cast %9 : vector<30xf32> to vector<1x30xf32>
    %cst_7 = arith.constant 1.250000e-01 : f32
    %11 = vector.broadcast %cst_7 : f32 to vector<1x30xf32>
    %12 = arith.mulf %7, %11 : vector<1x30xf32>
    %cst_8 = arith.constant 1.250000e-01 : f32
    %13 = vector.broadcast %cst_8 : f32 to vector<1x30xf32>
    %14 = arith.mulf %10, %13 : vector<1x30xf32>
    %15 = arith.mulf %12, %12 : vector<1x30xf32>
    %16 = arith.subf %14, %15 : vector<1x30xf32>
    %cst_9 = arith.constant 9.99999974E-6 : f32
    %17 = vector.broadcast %cst_9 : f32 to vector<1x30xf32>
    %18 = arith.addf %16, %17 : vector<1x30xf32>
    %19 = math.rsqrt %18 : vector<1x30xf32>
    %c0_10 = arith.constant 0 : index
    %c0_11 = arith.constant 0 : index
    %20 = vector.load %arg3[%c0_10, %c0_11] : memref<1x30xf32, #tpu.memory_space<vmem>>, vector<1x30xf32>
    %21 = arith.mulf %19, %20 : vector<1x30xf32>
    %c0_12 = arith.constant 0 : index
    %c0_13 = arith.constant 0 : index
    %22 = vector.load %arg4[%c0_12, %c0_13] : memref<1x30xf32, #tpu.memory_space<vmem>>, vector<1x30xf32>
    %23 = arith.mulf %12, %21 : vector<1x30xf32>
    %24 = arith.subf %22, %23 : vector<1x30xf32>
    %25 = vector.broadcast %21 : vector<1x30xf32> to vector<8x30xf32>
    %26 = arith.mulf %5, %25 : vector<8x30xf32>
    %27 = vector.broadcast %24 : vector<1x30xf32> to vector<8x30xf32>
    %28 = arith.addf %26, %27 : vector<8x30xf32>
    %cst_14 = arith.constant 0.000000e+00 : f32
    %29 = vector.broadcast %cst_14 : f32 to vector<8x30xf32>
    %30 = arith.maximumf %28, %29 : vector<8x30xf32>
    %c0_15 = arith.constant 0 : index
    %c0_16 = arith.constant 0 : index
    %31 = vector.load %arg5[%c0_15, %c0_16] : memref<30x30xf32, #tpu.memory_space<vmem>>, vector<30x30xf32>
    %cst_17 = arith.constant dense<0.000000e+00> : vector<8x30xf32>
    %32 = tpu.matmul %30, %31, %cst_17 {dimension_numbers = #tpu.dot_dimension_numbers<[1], [0], [0], [1], [0, 0, 1, 1], [], []>} : vector<8x30xf32>, vector<30x30xf32>, vector<8x30xf32> -> vector<8x30xf32>
    %c0_18 = arith.constant 0 : index
    %c0_19 = arith.constant 0 : index
    %33 = vector.load %arg6[%c0_18, %c0_19] : memref<1x30xf32, #tpu.memory_space<vmem>>, vector<1x30xf32>
    %34 = vector.broadcast %33 : vector<1x30xf32> to vector<8x30xf32>
    %35 = arith.addf %32, %34 : vector<8x30xf32>
    %cst_20 = arith.constant 0.000000e+00 : f32
    %36 = vector.broadcast %cst_20 : f32 to vector<8x30xf32>
    %37 = arith.maximumf %35, %36 : vector<8x30xf32>
    %cst_21 = arith.constant 0.000000e+00 : f32
    %38 = vector.broadcast %cst_21 : f32 to vector<2x24xf32>
    %c0_22 = arith.constant 0 : index
    %c0_23 = arith.constant 0 : index
    %c0_24 = arith.constant 0 : index
    %39 = vector.load %arg7[%c0_22, %c0_23, %c0_24] : memref<4x2x8xf32, #tpu.memory_space<vmem>>, vector<1x2x8xf32>
    %40 = vector.shape_cast %39 : vector<1x2x8xf32> to vector<2x8xf32>
    %cst_25 = arith.constant dense<0.000000e+00> : vector<2x30xf32>
    %41 = tpu.matmul %40, %37, %cst_25 {dimension_numbers = #tpu.dot_dimension_numbers<[1], [0], [0], [1], [0, 0, 1, 1], [], []>} : vector<2x8xf32>, vector<8x30xf32>, vector<2x30xf32> -> vector<2x30xf32>
    %c0_26 = arith.constant 0 : index
    %c0_27 = arith.constant 0 : index
    %c0_28 = arith.constant 0 : index
    %42 = vector.load %arg8[%c0_26, %c0_27, %c0_28] : memref<4x30x24xf32, #tpu.memory_space<vmem>>, vector<1x30x24xf32>
    %43 = vector.shape_cast %42 : vector<1x30x24xf32> to vector<30x24xf32>
    %cst_29 = arith.constant dense<0.000000e+00> : vector<2x24xf32>
    %44 = tpu.matmul %41, %43, %cst_29 {dimension_numbers = #tpu.dot_dimension_numbers<[1], [0], [0], [1], [0, 0, 1, 1], [], []>} : vector<2x30xf32>, vector<30x24xf32>, vector<2x24xf32> -> vector<2x24xf32>
    %45 = arith.addf %38, %44 : vector<2x24xf32>
    %c1 = arith.constant 1 : index
    %c0_30 = arith.constant 0 : index
    %c0_31 = arith.constant 0 : index
    %46 = vector.load %arg7[%c1, %c0_30, %c0_31] : memref<4x2x8xf32, #tpu.memory_space<vmem>>, vector<1x2x8xf32>
    %47 = vector.shape_cast %46 : vector<1x2x8xf32> to vector<2x8xf32>
    %cst_32 = arith.constant dense<0.000000e+00> : vector<2x30xf32>
    %48 = tpu.matmul %47, %37, %cst_32 {dimension_numbers = #tpu.dot_dimension_numbers<[1], [0], [0], [1], [0, 0, 1, 1], [], []>} : vector<2x8xf32>, vector<8x30xf32>, vector<2x30xf32> -> vector<2x30xf32>
    %c1_33 = arith.constant 1 : index
    %c0_34 = arith.constant 0 : index
    %c0_35 = arith.constant 0 : index
    %49 = vector.load %arg8[%c1_33, %c0_34, %c0_35] : memref<4x30x24xf32, #tpu.memory_space<vmem>>, vector<1x30x24xf32>
    %50 = vector.shape_cast %49 : vector<1x30x24xf32> to vector<30x24xf32>
    %cst_36 = arith.constant dense<0.000000e+00> : vector<2x24xf32>
    %51 = tpu.matmul %48, %50, %cst_36 {dimension_numbers = #tpu.dot_dimension_numbers<[1], [0], [0], [1], [0, 0, 1, 1], [], []>} : vector<2x30xf32>, vector<30x24xf32>, vector<2x24xf32> -> vector<2x24xf32>
    %52 = arith.addf %45, %51 : vector<2x24xf32>
    %c2 = arith.constant 2 : index
    %c0_37 = arith.constant 0 : index
    %c0_38 = arith.constant 0 : index
    %53 = vector.load %arg7[%c2, %c0_37, %c0_38] : memref<4x2x8xf32, #tpu.memory_space<vmem>>, vector<1x2x8xf32>
    %54 = vector.shape_cast %53 : vector<1x2x8xf32> to vector<2x8xf32>
    %cst_39 = arith.constant dense<0.000000e+00> : vector<2x30xf32>
    %55 = tpu.matmul %54, %37, %cst_39 {dimension_numbers = #tpu.dot_dimension_numbers<[1], [0], [0], [1], [0, 0, 1, 1], [], []>} : vector<2x8xf32>, vector<8x30xf32>, vector<2x30xf32> -> vector<2x30xf32>
    %c2_40 = arith.constant 2 : index
    %c0_41 = arith.constant 0 : index
    %c0_42 = arith.constant 0 : index
    %56 = vector.load %arg8[%c2_40, %c0_41, %c0_42] : memref<4x30x24xf32, #tpu.memory_space<vmem>>, vector<1x30x24xf32>
    %57 = vector.shape_cast %56 : vector<1x30x24xf32> to vector<30x24xf32>
    %cst_43 = arith.constant dense<0.000000e+00> : vector<2x24xf32>
    %58 = tpu.matmul %55, %57, %cst_43 {dimension_numbers = #tpu.dot_dimension_numbers<[1], [0], [0], [1], [0, 0, 1, 1], [], []>} : vector<2x30xf32>, vector<30x24xf32>, vector<2x24xf32> -> vector<2x24xf32>
    %59 = arith.addf %52, %58 : vector<2x24xf32>
    %c3 = arith.constant 3 : index
    %c0_44 = arith.constant 0 : index
    %c0_45 = arith.constant 0 : index
    %60 = vector.load %arg7[%c3, %c0_44, %c0_45] : memref<4x2x8xf32, #tpu.memory_space<vmem>>, vector<1x2x8xf32>
    %61 = vector.shape_cast %60 : vector<1x2x8xf32> to vector<2x8xf32>
    %cst_46 = arith.constant dense<0.000000e+00> : vector<2x30xf32>
    %62 = tpu.matmul %61, %37, %cst_46 {dimension_numbers = #tpu.dot_dimension_numbers<[1], [0], [0], [1], [0, 0, 1, 1], [], []>} : vector<2x8xf32>, vector<8x30xf32>, vector<2x30xf32> -> vector<2x30xf32>
    %c3_47 = arith.constant 3 : index
    %c0_48 = arith.constant 0 : index
    %c0_49 = arith.constant 0 : index
    %63 = vector.load %arg8[%c3_47, %c0_48, %c0_49] : memref<4x30x24xf32, #tpu.memory_space<vmem>>, vector<1x30x24xf32>
    %64 = vector.shape_cast %63 : vector<1x30x24xf32> to vector<30x24xf32>
    %cst_50 = arith.constant dense<0.000000e+00> : vector<2x24xf32>
    %65 = tpu.matmul %62, %64, %cst_50 {dimension_numbers = #tpu.dot_dimension_numbers<[1], [0], [0], [1], [0, 0, 1, 1], [], []>} : vector<2x30xf32>, vector<30x24xf32>, vector<2x24xf32> -> vector<2x24xf32>
    %66 = arith.addf %59, %65 : vector<2x24xf32>
    %c0_51 = arith.constant 0 : index
    %c0_52 = arith.constant 0 : index
    %67 = vector.load %arg9[%c0_51, %c0_52] : memref<1x24xf32, #tpu.memory_space<vmem>>, vector<1x24xf32>
    %68 = vector.broadcast %67 : vector<1x24xf32> to vector<2x24xf32>
    %69 = arith.addf %66, %68 : vector<2x24xf32>
    %c0_53 = arith.constant 0 : index
    %c0_54 = arith.constant 0 : index
    %70 = vector.load %arg10[%c0_53, %c0_54] : memref<2x24xf32, #tpu.memory_space<vmem>>, vector<2x24xf32>
    tpu.vector_store %arg10[%c0_53, %c0_54], %69 {strides = array<i32>} : memref<2x24xf32, #tpu.memory_space<vmem>>, vector<2x24xf32>,
    return
  }
}

</mosaic_0001>

<llo_original>
// kernel: tpu_custom_call.1
$region0: #{tpu_custom_call.1}
  #allocation0 [shape = 'u32[]', space=smem, size = 0x4, offset = 0x4, fixed_abs, tag = 'smem constant byte address 0x4 - core index']
  #allocation1 [shape = 'u32[144,128]{1,0:T(1,128)}', space=vmem, size = 0x12000, scoped, tag = 'internal scratch']
  %s0 = inlined_call_operand.vmem [shape: f32[8,400], index: 0, kind: input, shape index: {}]
  %s1 = inlined_call_operand.vmem [shape: f32[400,30], index: 1, kind: input, shape index: {}]
  %s2 = inlined_call_operand.vmem [shape: f32[1,30], index: 2, kind: input, shape index: {}]
  %s3 = inlined_call_operand.vmem [shape: f32[1,30], index: 3, kind: input, shape index: {}]
  %s4 = inlined_call_operand.vmem [shape: f32[1,30], index: 4, kind: input, shape index: {}]
  %s5 = inlined_call_operand.vmem [shape: f32[30,30], index: 5, kind: input, shape index: {}]
  %s6 = inlined_call_operand.vmem [shape: f32[1,30], index: 6, kind: input, shape index: {}]
  %s7 = inlined_call_operand.vmem [shape: f32[4,2,8], index: 7, kind: input, shape index: {}]
  %s8 = inlined_call_operand.vmem [shape: f32[4,30,24], index: 8, kind: input, shape index: {}]
  %s9 = inlined_call_operand.vmem [shape: f32[1,24], index: 9, kind: input, shape index: {}]
  %s10 = inlined_call_operand.hbm [shape: f32[2,24], index: 10, kind: output, shape index: {}]
  %s11 = sld [smem:[#allocation0]]
  $region50: #{tpu_custom_call.1} parent=0
    _
  %s13 = ssub.s32 1, %s11
  %s14 = scalar_select 0, %s13, %s11
  $region1: #{tpu_custom_call.1} parent=0
    #allocation2 [shape = 'u8[1024]{0}', space=vmem, size = 0x400, scoped, tag = 'output window, operand 0, single buffered']
    #allocation3 [shape = 's32[1]{0}', space=sflag, size = 0x4, scoped, tag = 'scoped memory for tpu_custom_call.1']
    %15 = vsyncpa [#allocation3], 0
    // Predicated region
    $region2: #{tpu_custom_call.1} parent=1 // pred_check
      _
    $region3: #{tpu_custom_call.1} parent=1 // pred_check_branch
      %17 = sbr.rel (0) target = $region5
    $region4: #{tpu_custom_call.1} parent=1 // pred_region
      _
    $region5: #{tpu_custom_call.1} parent=1 // pred_fallthru
      _
    // Predicated region
    $region6: #{tpu_custom_call.1} parent=1 // pred_check
      _
    $region7: #{tpu_custom_call.1} parent=1 // pred_check_branch
      %19 = sbr.rel (0) target = $region9
    $region8: #{tpu_custom_call.1} parent=1 // pred_region
      _
    $region9: #{tpu_custom_call.1} parent=1 // pred_fallthru
      _
    // Predicated region
    $region10: #{tpu_custom_call.1} parent=1 // pred_check
      _
    $region11: #{tpu_custom_call.1} parent=1 // pred_check_branch
      %21 = sbr.rel (0) target = $region13
    $region12: #{tpu_custom_call.1} parent=1 // pred_region
      _
    $region13: #{tpu_custom_call.1} parent=1 // pred_fallthru
      _
    // Predicated region
    $region14: #{tpu_custom_call.1} parent=1 // pred_check
      _
    $region15: #{tpu_custom_call.1} parent=1 // pred_check_branch
      %23 = sbr.rel (0) target = $region17
    $region16: #{tpu_custom_call.1} parent=1 // pred_region
      _
    $region17: #{tpu_custom_call.1} parent=1 // pred_fallthru
      _
    // Predicated region
    $region18: #{tpu_custom_call.1} parent=1 // pred_check
      _
    $region19: #{tpu_custom_call.1} parent=1 // pred_check_branch
      %25 = sbr.rel (0) target = $region21
    $region20: #{tpu_custom_call.1} parent=1 // pred_region
      _
    $region21: #{tpu_custom_call.1} parent=1 // pred_fallthru
      _
    // Predicated region
    $region22: #{tpu_custom_call.1} parent=1 // pred_check
      _
    $region23: #{tpu_custom_call.1} parent=1 // pred_check_branch
      %27 = sbr.rel (0) target = $region25
    $region24: #{tpu_custom_call.1} parent=1 // pred_region
      _
    $region25: #{tpu_custom_call.1} parent=1 // pred_fallthru
      _
    // Predicated region
    $region26: #{tpu_custom_call.1} parent=1 // pred_check
      _
    $region27: #{tpu_custom_call.1} parent=1 // pred_check_branch
      %29 = sbr.rel (0) target = $region29
    $region28: #{tpu_custom_call.1} parent=1 // pred_region
      _
    $region29: #{tpu_custom_call.1} parent=1 // pred_fallthru
      _
    // Predicated region
    $region30: #{tpu_custom_call.1} parent=1 // pred_check
      _
    $region31: #{tpu_custom_call.1} parent=1 // pred_check_branch
      %31 = sbr.rel (0) target = $region33
    $region32: #{tpu_custom_call.1} parent=1 // pred_region
      _
    $region33: #{tpu_custom_call.1} parent=1 // pred_fallthru
      _
    // Predicated region
    $region34: #{tpu_custom_call.1} parent=1 // pred_check
      _
    $region35: #{tpu_custom_call.1} parent=1 // pred_check_branch
      %33 = sbr.rel (0) target = $region37
    $region36: #{tpu_custom_call.1} parent=1 // pred_region
      _
    $region37: #{tpu_custom_call.1} parent=1 // pred_fallthru
      _
    // Predicated region
    $region38: #{tpu_custom_call.1} parent=1 // pred_check
      _
    $region39: #{tpu_custom_call.1} parent=1 // pred_check_branch
      %35 = sbr.rel (0) target = $region41
    $region40: #{tpu_custom_call.1} parent=1 // pred_region
      _
    $region41: #{tpu_custom_call.1} parent=1 // pred_fallthru
      _
    %v36 = vld [vmem:[%s0] sm:$0xff]
    %v37 = vld [vmem:[%s0 + $0x8] sm:$0xff]
    %v38 = vld [vmem:[%s0 + $0x10] sm:$0xff]
    %v39 = vld [vmem:[%s0 + $0x18] sm:$0xff]
    %v40 = vld [vmem:[%s1] sm:$0xff]
    %v41 = vld [vmem:[%s1 + $0x8] sm:$0xff]
    %v42 = vld [vmem:[%s1 + $0x10] sm:$0xff]
    %v43 = vld [vmem:[%s1 + $0x18] sm:$0xff]
    %v44 = vld [vmem:[%s1 + $0x20] sm:$0xff]
    %v45 = vld [vmem:[%s1 + $0x28] sm:$0xff]
    %v46 = vld [vmem:[%s1 + $0x30] sm:$0xff]
    %v47 = vld [vmem:[%s1 + $0x38] sm:$0xff]
    %v48 = vld [vmem:[%s1 + $0x40] sm:$0xff]
    %v49 = vld [vmem:[%s1 + $0x48] sm:$0xff]
    %v50 = vld [vmem:[%s1 + $0x50] sm:$0xff]
    %v51 = vld [vmem:[%s1 + $0x58] sm:$0xff]
    %v52 = vld [vmem:[%s1 + $0x60] sm:$0xff]
    %v53 = vld [vmem:[%s1 + $0x68] sm:$0xff]
    %v54 = vld [vmem:[%s1 + $0x70] sm:$0xff]
    %v55 = vld [vmem:[%s1 + $0x78] sm:$0xff]
    %v56 = vld [vmem:[%s1 + $0x80] sm:$0xff]
    %v57 = vld [vmem:[%s1 + $0x88] sm:$0xff]
    %v58 = vld [vmem:[%s1 + $0x90] sm:$0xff]
    %v59 = vld [vmem:[%s1 + $0x98] sm:$0xff]
    %v60 = vld [vmem:[%s1 + $0xa0] sm:$0xff]
    %v61 = vld [vmem:[%s1 + $0xa8] sm:$0xff]
    %v62 = vld [vmem:[%s1 + $0xb0] sm:$0xff]
    %v63 = vld [vmem:[%s1 + $0xb8] sm:$0xff]
    %v64 = vld [vmem:[%s1 + $0xc0] sm:$0xff]
    %v65 = vld [vmem:[%s1 + $0xc8] sm:$0xff]
    %v66 = vld [vmem:[%s1 + $0xd0] sm:$0xff]
    %v67 = vld [vmem:[%s1 + $0xd8] sm:$0xff]
    %v68 = vld [vmem:[%s1 + $0xe0] sm:$0xff]
    %v69 = vld [vmem:[%s1 + $0xe8] sm:$0xff]
    %v70 = vld [vmem:[%s1 + $0xf0] sm:$0xff]
    %v71 = vld [vmem:[%s1 + $0xf8] sm:$0xff]
    %v72 = vld [vmem:[%s1 + $0x100] sm:$0xff]
    %v73 = vld [vmem:[%s1 + $0x108] sm:$0xff]
    %v74 = vld [vmem:[%s1 + $0x110] sm:$0xff]
    %v75 = vld [vmem:[%s1 + $0x118] sm:$0xff]
    %v76 = vld [vmem:[%s1 + $0x120] sm:$0xff]
    %v77 = vld [vmem:[%s1 + $0x128] sm:$0xff]
    %v78 = vld [vmem:[%s1 + $0x130] sm:$0xff]
    %v79 = vld [vmem:[%s1 + $0x138] sm:$0xff]
    %v80 = vld [vmem:[%s1 + $0x140] sm:$0xff]
    %v81 = vld [vmem:[%s1 + $0x148] sm:$0xff]
    %v82 = vld [vmem:[%s1 + $0x150] sm:$0xff]
    %v83 = vld [vmem:[%s1 + $0x158] sm:$0xff]
    %v84 = vld [vmem:[%s1 + $0x160] sm:$0xff]
    %v85 = vld [vmem:[%s1 + $0x168] sm:$0xff]
    %v86 = vld [vmem:[%s1 + $0x170] sm:$0xff]
    %v87 = vld [vmem:[%s1 + $0x178] sm:$0xff]
    %v88 = vld [vmem:[%s1 + $0x180] sm:$0xff]
    %v89 = vld [vmem:[%s1 + $0x188] sm:$0xff]
    %v90 = vld [vmem:[%s2] sm:$0x1]
    %v92 = vlaneseq
    %v93 = vshrl.u32 %v92, 7
    %v94 = vsub.s32 0, %v93
    %v95 = vrot.slane %v90, %v94
    %vm97 = vcmask 130048
    %v99 = vsel %vm97, %v39, 0
    %101 = vmatprep.subr.mxu0 0.0
    %102 = vmatpush1.msra.mxu0 %v40
    %103 = vmatprep.subr.mxu0 0.0
    %104 = vmatpush1.msra.mxu0 %v41
    %105 = vmatprep.subr.mxu0 0.0
    %106 = vmatpush1.msra.mxu0 %v42
    %107 = vmatprep.subr.mxu0 0.0
    %108 = vmatpush1.msra.mxu0 %v43
    %109 = vmatprep.subr.mxu0 0.0
    %110 = vmatpush1.msra.mxu0 %v44
    %111 = vmatprep.subr.mxu0 0.0
    %112 = vmatpush1.msra.mxu0 %v45
    %113 = vmatprep.subr.mxu0 0.0
    %114 = vmatpush1.msra.mxu0 %v46
    %115 = vmatprep.subr.mxu0 0.0
    %116 = vmatpush1.msra.mxu0 %v47
    %117 = vmatprep.subr.mxu0 0.0
    %118 = vmatpush1.msra.mxu0 %v48
    %119 = vmatprep.subr.mxu0 0.0
    %120 = vmatpush1.msra.mxu0 %v49
    %121 = vmatprep.subr.mxu0 0.0
    %122 = vmatpush1.msra.mxu0 %v50
    %123 = vmatprep.subr.mxu0 0.0
    %124 = vmatpush1.msra.mxu0 %v51
    %125 = vmatprep.subr.mxu0 0.0
    %126 = vmatpush1.msra.mxu0 %v52
    %127 = vmatprep.subr.mxu0 0.0
    %128 = vmatpush1.msra.mxu0 %v53
    %129 = vmatprep.subr.mxu0 0.0
    %130 = vmatpush1.msra.mxu0 %v54
    %131 = vmatprep.subr.mxu0 0.0
    %132 = vmatpush1.msra.mxu0 %v55
    %133 = vmatprep.subr.mxu0 0.0
    %134 = vmatpush1.msra.mxu0 %v56
    %135 = vmatprep.subr.mxu0 0.0
    %136 = vmatpush1.msra.mxu0 %v57
    %137 = vmatprep.subr.mxu0 0.0
    %138 = vmatpush1.msra.mxu0 %v58
    %139 = vmatprep.subr.mxu0 0.0
    %140 = vmatpush1.msra.mxu0 %v59
    %141 = vmatprep.subr.mxu0 0.0
    %142 = vmatpush1.msra.mxu0 %v60
    %143 = vmatprep.subr.mxu0 0.0
    %144 = vmatpush1.msra.mxu0 %v61
    %145 = vmatprep.subr.mxu0 0.0
    %146 = vmatpush1.msra.mxu0 %v62
    %147 = vmatprep.subr.mxu0 0.0
    %148 = vmatpush1.msra.mxu0 %v63
    %149 = vmatprep.subr.mxu0 0.0
    %150 = vmatpush1.msra.mxu0 %v64
    %151 = vmatprep.subr.mxu0 0.0
    %152 = vmatpush1.msra.mxu0 %v65
    %153 = vmatprep.subr.mxu0 0.0
    %154 = vmatpush1.msra.mxu0 %v66
    %155 = vmatprep.subr.mxu0 0.0
    %156 = vmatpush1.msra.mxu0 %v67
    %157 = vmatprep.subr.mxu0 0.0
    %158 = vmatpush1.msra.mxu0 %v68
    %159 = vmatprep.subr.mxu0 0.0
    %160 = vmatpush1.msra.mxu0 %v69
    %161 = vmatprep.subr.mxu0 0.0
    %162 = vmatpush1.msra.mxu0 %v70
    %163 = vmatprep.subr.mxu0 0.0
    %164 = vmatpush1.msra.mxu0 %v71
    %165 = vmatprep.mubr.f32.mxu0 %v37
    %166 = vmatmul.mubr.f32.gmra.mrb[0].mxu0 %v36
    %v167 = vpop.f32.mrb[0].mxu0
    %v168 = vadd.f32 %v95, %v167
    %v169 = vpop.f32.mrb[0].mxu0
    %170 = vdwg.mxu0
    %171 = vmatprep.subr.mxu0 0.0
    %172 = vmatpush1.msra.mxu0 %v72
    %173 = vmatprep.subr.mxu0 0.0
    %174 = vmatpush1.msra.mxu0 %v73
    %175 = vmatprep.subr.mxu0 0.0
    %176 = vmatpush1.msra.mxu0 %v74
    %177 = vmatprep.subr.mxu0 0.0
    %178 = vmatpush1.msra.mxu0 %v75
    %179 = vmatprep.subr.mxu0 0.0
    %180 = vmatpush1.msra.mxu0 %v76
    %181 = vmatprep.subr.mxu0 0.0
    %182 = vmatpush1.msra.mxu0 %v77
    %183 = vmatprep.subr.mxu0 0.0
    %184 = vmatpush1.msra.mxu0 %v78
    %185 = vmatprep.subr.mxu0 0.0
    %186 = vmatpush1.msra.mxu0 %v79
    %187 = vmatprep.subr.mxu0 0.0
    %188 = vmatpush1.msra.mxu0 %v80
    %189 = vmatprep.subr.mxu0 0.0
    %190 = vmatpush1.msra.mxu0 %v81
    %191 = vmatprep.subr.mxu0 0.0
    %192 = vmatpush1.msra.mxu0 %v82
    %193 = vmatprep.subr.mxu0 0.0
    %194 = vmatpush1.msra.mxu0 %v83
    %195 = vmatprep.subr.mxu0 0.0
    %196 = vmatpush1.msra.mxu0 %v84
    %197 = vmatprep.subr.mxu0 0.0
    %198 = vmatpush1.msra.mxu0 %v85
    %199 = vmatprep.subr.mxu0 0.0
    %200 = vmatpush1.msra.mxu0 %v86
    %201 = vmatprep.subr.mxu0 0.0
    %202 = vmatpush1.msra.mxu0 %v87
    %203 = vmatprep.subr.mxu0 0.0
    %204 = vmatpush1.msra.mxu0 %v88
    %205 = vmatprep.subr.mxu0 0.0
    %206 = vmatpush1.msra.mxu0 %v89
    %207 = vmatprep.subr.mxu0 0.0
    %208 = vmatpush1.msra.mxu0 0.0
    %209 = vmatprep.subr.mxu0 0.0
    %210 = vmatpush1.msra.mxu0 0.0
    %211 = vmatprep.subr.mxu0 0.0
    %212 = vmatpush1.msra.mxu0 0.0
    %213 = vmatprep.subr.mxu0 0.0
    %214 = vmatpush1.msra.mxu0 0.0
    %215 = vmatprep.subr.mxu0 0.0
    %216 = vmatpush1.msra.mxu0 0.0
    %217 = vmatprep.subr.mxu0 0.0
    %218 = vmatpush1.msra.mxu0 0.0
    %219 = vmatprep.subr.mxu0 0.0
    %220 = vmatpush1.msra.mxu0 0.0
    %221 = vmatprep.subr.mxu0 0.0
    %222 = vmatpush1.msra.mxu0 0.0
    %223 = vmatprep.subr.mxu0 0.0
    %224 = vmatpush1.msra.mxu0 0.0
    %225 = vmatprep.subr.mxu0 0.0
    %226 = vmatpush1.msra.mxu0 0.0
    %227 = vmatprep.subr.mxu0 0.0
    %228 = vmatpush1.msra.mxu0 0.0
    %229 = vmatprep.subr.mxu0 0.0
    %230 = vmatpush1.msra.mxu0 0.0
    %231 = vmatprep.subr.mxu0 0.0
    %232 = vmatpush1.msra.mxu0 0.0
    %233 = vmatprep.subr.mxu0 0.0
    %234 = vmatpush1.msra.mxu0 0.0
    %235 = vmatprep.mubr.f32.mxu0 %v99
    %236 = vmatmul.mubr.f32.gmra.mrb[0].mxu0 %v38
    %v237 = vpop.f32.mrb[0].mxu0
    %v238 = vadd.f32 %v168, %v237
    %v239 = vpop.f32.mrb[0].mxu0
    %240 = vdwg.mxu0
    %vm241 = vcmask 244736
    %v242 = vsel %vm241, %v238, 0.0
    %v243 = vrot.slane %v242, 4
    %v244 = vadd.f32 %v242, %v243
    %v245 = vrot.slane %v244, 2
    %v246 = vadd.f32 %v244, %v245
    %v247 = vrot.slane %v246, 1
    %v248 = vadd.f32 %v246, %v247
    %v249 = vmul.f32 %v238, %v238
    %v250 = vsel %vm241, %v249, 0.0
    %v251 = vrot.slane %v250, 4
    %v252 = vadd.f32 %v250, %v251
    %v253 = vrot.slane %v252, 2
    %v254 = vadd.f32 %v252, %v253
    %v255 = vrot.slane %v254, 1
    %v256 = vadd.f32 %v254, %v255
    %v257 = vmul.f32 %v248, 0.125
    %v258 = vmul.f32 %v256, 0.125
    %v259 = vmul.f32 %v257, %v257
    %v260 = vsub.f32 %v258, %v259
    %v261 = vadd.f32 %v260, 1e-05
    %v262 = vrsqrt.pop %v261
    %v263 = vld [vmem:[%s3] sm:$0x1]
    %v264 = vmul.f32 %v262, %v263
    %v265 = vld [vmem:[%s4] sm:$0x1]
    %v266 = vmul.f32 %v257, %v264
    %v267 = vsub.f32 %v265, %v266
    %v268 = vlaneseq
    %v269 = vshrl.u32 %v268, 7
    %v270 = vsub.s32 0, %v269
    %v271 = vrot.slane %v264, %v270
    %v272 = vmul.f32 %v238, %v271
    %v274 = vlaneseq
    %v275 = vshrl.u32 %v274, 7
    %v276 = vsub.s32 0, %v275
    %v277 = vrot.slane %v267, %v276
    %v279 = vadd.f32 %v272, %v277
    %v280 = vmax.f32 %v279, 0.0
    %v281 = vld [vmem:[%s5] sm:$0xff]
    %v282 = vld [vmem:[%s5 + $0x8] sm:$0xff]
    %v283 = vld [vmem:[%s5 + $0x10] sm:$0xff]
    %v284 = vld [vmem:[%s5 + $0x18] sm:$0x3f]
    %v285 = vld [vmem:[%s6] sm:$0x1]
    %v287 = vlaneseq
    %v288 = vshrl.u32 %v287, 7
    %v289 = vsub.s32 0, %v288
    %v290 = vrot.slane %v285, %v289
    %v293 = vsel %vm241, %v280, 0
    %vm295 = vcmask 1045504
    %v297 = vsel %vm295, %v284, 0
    %299 = vmatprep.subr.mxu0 0.0
    %300 = vmatpush1.msra.mxu0 %v281
    %301 = vmatprep.subr.mxu0 0.0
    %302 = vmatpush1.msra.mxu0 %v282
    %303 = vmatprep.subr.mxu0 0.0
    %304 = vmatpush1.msra.mxu0 %v283
    %305 = vmatprep.subr.mxu0 0.0
    %306 = vmatpush1.msra.mxu0 %v297
    %307 = vmatprep.subr.mxu0 0.0
    %308 = vmatpush1.msra.mxu0 0.0
    %309 = vmatprep.subr.mxu0 0.0
    %310 = vmatpush1.msra.mxu0 0.0
    %311 = vmatprep.subr.mxu0 0.0
    %312 = vmatpush1.msra.mxu0 0.0
    %313 = vmatprep.subr.mxu0 0.0
    %314 = vmatpush1.msra.mxu0 0.0
    %315 = vmatprep.subr.mxu0 0.0
    %316 = vmatpush1.msra.mxu0 0.0
    %317 = vmatprep.subr.mxu0 0.0
    %318 = vmatpush1.msra.mxu0 0.0
    %319 = vmatprep.subr.mxu0 0.0
    %320 = vmatpush1.msra.mxu0 0.0
    %321 = vmatprep.subr.mxu0 0.0
    %322 = vmatpush1.msra.mxu0 0.0
    %323 = vmatprep.subr.mxu0 0.0
    %324 = vmatpush1.msra.mxu0 0.0
    %325 = vmatprep.subr.mxu0 0.0
    %326 = vmatpush1.msra.mxu0 0.0
    %327 = vmatprep.subr.mxu0 0.0
    %328 = vmatpush1.msra.mxu0 0.0
    %329 = vmatprep.subr.mxu0 0.0
    %330 = vmatpush1.msra.mxu0 0.0
    %331 = vmatprep.subr.mxu0 0.0
    %332 = vmatpush1.msra.mxu0 0.0
    %333 = vmatprep.subr.mxu0 0.0
    %334 = vmatpush1.msra.mxu0 0.0
    %335 = vmatprep.subr.mxu0 0.0
    %336 = vmatpush1.msra.mxu0 0.0
    %337 = vmatprep.subr.mxu0 0.0
    %338 = vmatpush1.msra.mxu0 0.0
    %339 = vmatprep.subr.mxu0 0.0
    %340 = vmatpush1.msra.mxu0 0.0
    %341 = vmatprep.subr.mxu0 0.0
    %342 = vmatpush1.msra.mxu0 0.0
    %343 = vmatprep.subr.mxu0 0.0
    %344 = vmatpush1.msra.mxu0 0.0
    %345 = vmatprep.subr.mxu0 0.0
    %346 = vmatpush1.msra.mxu0 0.0
    %347 = vmatprep.subr.mxu0 0.0
    %348 = vmatpush1.msra.mxu0 0.0
    %349 = vmatprep.subr.mxu0 0.0
    %350 = vmatpush1.msra.mxu0 0.0
    %351 = vmatprep.subr.mxu0 0.0
    %352 = vmatpush1.msra.mxu0 0.0
    %353 = vmatprep.subr.mxu0 0.0
    %354 = vmatpush1.msra.mxu0 0.0
    %355 = vmatprep.subr.mxu0 0.0
    %356 = vmatpush1.msra.mxu0 0.0
    %357 = vmatprep.subr.mxu0 0.0
    %358 = vmatpush1.msra.mxu0 0.0
    %359 = vmatprep.subr.mxu0 0.0
    %360 = vmatpush1.msra.mxu0 0.0
    %361 = vmatprep.subr.mxu0 0.0
    %362 = vmatpush1.msra.mxu0 0.0
    %363 = vmatprep.mubr.f32.mxu0 0.0
    %364 = vmatmul.mubr.f32.gmra.mrb[0].mxu0 %v293
    %v365 = vpop.f32.mrb[0].mxu0
    %v366 = vadd.f32 %v290, %v365
    %v367 = vpop.f32.mrb[0].mxu0
    %368 = vdwg.mxu0
    %v369 = vmax.f32 %v366, 0.0
    %v370 = vld [vmem:[%s7] sm:$0x3]
    %vm371 = vcmask 64512
    %v373 = vsel %vm371, %v370, 0
    %375 = vmatprep.subr.mxu0 0.0
    %376 = vmatpush1.msra.mxu0 %v369
    %377 = vmatprep.subr.mxu0 0.0
    %378 = vmatpush1.msra.mxu0 0.0
    %379 = vmatprep.subr.mxu0 0.0
    %380 = vmatpush1.msra.mxu0 0.0
    %381 = vmatprep.subr.mxu0 0.0
    %382 = vmatpush1.msra.mxu0 0.0
    %383 = vmatprep.subr.mxu0 0.0
    %384 = vmatpush1.msra.mxu0 0.0
    %385 = vmatprep.subr.mxu0 0.0
    %386 = vmatpush1.msra.mxu0 0.0
    %387 = vmatprep.subr.mxu0 0.0
    %388 = vmatpush1.msra.mxu0 0.0
    %389 = vmatprep.subr.mxu0 0.0
    %390 = vmatpush1.msra.mxu0 0.0
    %391 = vmatprep.subr.mxu0 0.0
    %392 = vmatpush1.msra.mxu0 0.0
    %393 = vmatprep.subr.mxu0 0.0
    %394 = vmatpush1.msra.mxu0 0.0
    %395 = vmatprep.subr.mxu0 0.0
    %396 = vmatpush1.msra.mxu0 0.0
    %397 = vmatprep.subr.mxu0 0.0
    %398 = vmatpush1.msra.mxu0 0.0
    %399 = vmatprep.subr.mxu0 0.0
    %400 = vmatpush1.msra.mxu0 0.0
    %401 = vmatprep.subr.mxu0 0.0
    %402 = vmatpush1.msra.mxu0 0.0
    %403 = vmatprep.subr.mxu0 0.0
    %404 = vmatpush1.msra.mxu0 0.0
    %405 = vmatprep.subr.mxu0 0.0
    %406 = vmatpush1.msra.mxu0 0.0
    %407 = vmatprep.subr.mxu0 0.0
    %408 = vmatpush1.msra.mxu0 0.0
    %409 = vmatprep.subr.mxu0 0.0
    %410 = vmatpush1.msra.mxu0 0.0
    %411 = vmatprep.subr.mxu0 0.0
    %412 = vmatpush1.msra.mxu0 0.0
    %413 = vmatprep.subr.mxu0 0.0
    %414 = vmatpush1.msra.mxu0 0.0
    %415 = vmatprep.subr.mxu0 0.0
    %416 = vmatpush1.msra.mxu0 0.0
    %417 = vmatprep.subr.mxu0 0.0
    %418 = vmatpush1.msra.mxu0 0.0
    %419 = vmatprep.subr.mxu0 0.0
    %420 = vmatpush1.msra.mxu0 0.0
    %421 = vmatprep.subr.mxu0 0.0
    %422 = vmatpush1.msra.mxu0 0.0
    %423 = vmatprep.subr.mxu0 0.0
    %424 = vmatpush1.msra.mxu0 0.0
    %425 = vmatprep.subr.mxu0 0.0
    %426 = vmatpush1.msra.mxu0 0.0
    %427 = vmatprep.subr.mxu0 0.0
    %428 = vmatpush1.msra.mxu0 0.0
    %429 = vmatprep.subr.mxu0 0.0
    %430 = vmatpush1.msra.mxu0 0.0
    %431 = vmatprep.subr.mxu0 0.0
    %432 = vmatpush1.msra.mxu0 0.0
    %433 = vmatprep.subr.mxu0 0.0
    %434 = vmatpush1.msra.mxu0 0.0
    %435 = vmatprep.subr.mxu0 0.0
    %436 = vmatpush1.msra.mxu0 0.0
    %437 = vmatprep.subr.mxu0 0.0
    %438 = vmatpush1.msra.mxu0 0.0
    %439 = vmatprep.mubr.f32.mxu0 0.0
    %440 = vmatmul.mubr.f32.gmra.mrb[0].mxu0 %v373
    %v441 = vpop.f32.mrb[0].mxu0
    %v442 = vadd.f32 0.0, %v441
    %v443 = vpop.f32.mrb[0].mxu0
    %444 = vdwg.mxu0
    %v445 = vld [vmem:[%s8] sm:$0xff]
    %v446 = vld [vmem:[%s8 + $0x8] sm:$0xff]
    %v447 = vld [vmem:[%s8 + $0x10] sm:$0xff]
    %v448 = vld [vmem:[%s8 + $0x18] sm:$0x3f]
    %s449 = scalar_lea.vmem %s7, 2
    %v450 = vld [vmem:[%s449] sm:$0x3]
    %v452 = vsel %vm371, %v450, 0
    %454 = vmatprep.subr.mxu0 0.0
    %455 = vmatpush1.msra.mxu0 %v369
    %456 = vmatprep.subr.mxu0 0.0
    %457 = vmatpush1.msra.mxu0 0.0
    %458 = vmatprep.subr.mxu0 0.0
    %459 = vmatpush1.msra.mxu0 0.0
    %460 = vmatprep.subr.mxu0 0.0
    %461 = vmatpush1.msra.mxu0 0.0
    %462 = vmatprep.subr.mxu0 0.0
    %463 = vmatpush1.msra.mxu0 0.0
    %464 = vmatprep.subr.mxu0 0.0
    %465 = vmatpush1.msra.mxu0 0.0
    %466 = vmatprep.subr.mxu0 0.0
    %467 = vmatpush1.msra.mxu0 0.0
    %468 = vmatprep.subr.mxu0 0.0
    %469 = vmatpush1.msra.mxu0 0.0
    %470 = vmatprep.subr.mxu0 0.0
    %471 = vmatpush1.msra.mxu0 0.0
    %472 = vmatprep.subr.mxu0 0.0
    %473 = vmatpush1.msra.mxu0 0.0
    %474 = vmatprep.subr.mxu0 0.0
    %475 = vmatpush1.msra.mxu0 0.0
    %476 = vmatprep.subr.mxu0 0.0
    %477 = vmatpush1.msra.mxu0 0.0
    %478 = vmatprep.subr.mxu0 0.0
    %479 = vmatpush1.msra.mxu0 0.0
    %480 = vmatprep.subr.mxu0 0.0
    %481 = vmatpush1.msra.mxu0 0.0
    %482 = vmatprep.subr.mxu0 0.0
    %483 = vmatpush1.msra.mxu0 0.0
    %484 = vmatprep.subr.mxu0 0.0
    %485 = vmatpush1.msra.mxu0 0.0
    %486 = vmatprep.subr.mxu0 0.0
    %487 = vmatpush1.msra.mxu0 0.0
    %488 = vmatprep.subr.mxu0 0.0
    %489 = vmatpush1.msra.mxu0 0.0
    %490 = vmatprep.subr.mxu0 0.0
    %491 = vmatpush1.msra.mxu0 0.0
    %492 = vmatprep.subr.mxu0 0.0
    %493 = vmatpush1.msra.mxu0 0.0
    %494 = vmatprep.subr.mxu0 0.0
    %495 = vmatpush1.msra.mxu0 0.0
    %496 = vmatprep.subr.mxu0 0.0
    %497 = vmatpush1.msra.mxu0 0.0
    %498 = vmatprep.subr.mxu0 0.0
    %499 = vmatpush1.msra.mxu0 0.0
    %500 = vmatprep.subr.mxu0 0.0
    %501 = vmatpush1.msra.mxu0 0.0
    %502 = vmatprep.subr.mxu0 0.0
    %503 = vmatpush1.msra.mxu0 0.0
    %504 = vmatprep.subr.mxu0 0.0
    %505 = vmatpush1.msra.mxu0 0.0
    %506 = vmatprep.subr.mxu0 0.0
    %507 = vmatpush1.msra.mxu0 0.0
    %508 = vmatprep.subr.mxu0 0.0
    %509 = vmatpush1.msra.mxu0 0.0
    %510 = vmatprep.subr.mxu0 0.0
    %511 = vmatpush1.msra.mxu0 0.0
    %512 = vmatprep.subr.mxu0 0.0
    %513 = vmatpush1.msra.mxu0 0.0
    %514 = vmatprep.subr.mxu0 0.0
    %515 = vmatpush1.msra.mxu0 0.0
    %516 = vmatprep.subr.mxu0 0.0
    %517 = vmatpush1.msra.mxu0 0.0
    %518 = vmatprep.mubr.f32.mxu0 0.0
    %519 = vmatmul.mubr.f32.gmra.mrb[0].mxu0 %v452
    %v520 = vpop.f32.mrb[0].mxu0
    %v521 = vadd.f32 0.0, %v520
    %v522 = vpop.f32.mrb[0].mxu0
    %523 = vdwg.mxu0
    %s524 = scalar_lea.vmem %s8, 32
    %v525 = vld [vmem:[%s524] sm:$0xff]
    %v526 = vld [vmem:[%s524 + $0x8] sm:$0xff]
    %v527 = vld [vmem:[%s524 + $0x10] sm:$0xff]
    %v528 = vld [vmem:[%s524 + $0x18] sm:$0x3f]
    %v530 = vsel %vm241, %v521, 0
    %v533 = vsel %vm295, %v528, 0
    %535 = vmatprep.subr.mxu0 0.0
    %536 = vmatpush1.msra.mxu0 %v525
    %537 = vmatprep.subr.mxu0 0.0
    %538 = vmatpush1.msra.mxu0 %v526
    %539 = vmatprep.subr.mxu0 0.0
    %540 = vmatpush1.msra.mxu0 %v527
    %541 = vmatprep.subr.mxu0 0.0
    %542 = vmatpush1.msra.mxu0 %v533
    %543 = vmatprep.subr.mxu0 0.0
    %544 = vmatpush1.msra.mxu0 0.0
    %545 = vmatprep.subr.mxu0 0.0
    %546 = vmatpush1.msra.mxu0 0.0
    %547 = vmatprep.subr.mxu0 0.0
    %548 = vmatpush1.msra.mxu0 0.0
    %549 = vmatprep.subr.mxu0 0.0
    %550 = vmatpush1.msra.mxu0 0.0
    %551 = vmatprep.subr.mxu0 0.0
    %552 = vmatpush1.msra.mxu0 0.0
    %553 = vmatprep.subr.mxu0 0.0
    %554 = vmatpush1.msra.mxu0 0.0
    %555 = vmatprep.subr.mxu0 0.0
    %556 = vmatpush1.msra.mxu0 0.0
    %557 = vmatprep.subr.mxu0 0.0
    %558 = vmatpush1.msra.mxu0 0.0
    %559 = vmatprep.subr.mxu0 0.0
    %560 = vmatpush1.msra.mxu0 0.0
    %561 = vmatprep.subr.mxu0 0.0
    %562 = vmatpush1.msra.mxu0 0.0
    %563 = vmatprep.subr.mxu0 0.0
    %564 = vmatpush1.msra.mxu0 0.0
    %565 = vmatprep.subr.mxu0 0.0
    %566 = vmatpush1.msra.mxu0 0.0
    %567 = vmatprep.subr.mxu0 0.0
    %568 = vmatpush1.msra.mxu0 0.0
    %569 = vmatprep.subr.mxu0 0.0
    %570 = vmatpush1.msra.mxu0 0.0
    %571 = vmatprep.subr.mxu0 0.0
    %572 = vmatpush1.msra.mxu0 0.0
    %573 = vmatprep.subr.mxu0 0.0
    %574 = vmatpush1.msra.mxu0 0.0
    %575 = vmatprep.subr.mxu0 0.0
    %576 = vmatpush1.msra.mxu0 0.0
    %577 = vmatprep.subr.mxu0 0.0
    %578 = vmatpush1.msra.mxu0 0.0
    %579 = vmatprep.subr.mxu0 0.0
    %580 = vmatpush1.msra.mxu0 0.0
    %581 = vmatprep.subr.mxu0 0.0
    %582 = vmatpush1.msra.mxu0 0.0
    %583 = vmatprep.subr.mxu0 0.0
    %584 = vmatpush1.msra.mxu0 0.0
    %585 = vmatprep.subr.mxu0 0.0
    %586 = vmatpush1.msra.mxu0 0.0
    %587 = vmatprep.subr.mxu0 0.0
    %588 = vmatpush1.msra.mxu0 0.0
    %589 = vmatprep.subr.mxu0 0.0
    %590 = vmatpush1.msra.mxu0 0.0
    %591 = vmatprep.subr.mxu0 0.0
    %592 = vmatpush1.msra.mxu0 0.0
    %593 = vmatprep.subr.mxu0 0.0
    %594 = vmatpush1.msra.mxu0 0.0
    %595 = vmatprep.subr.mxu0 0.0
    %596 = vmatpush1.msra.mxu0 0.0
    %597 = vmatprep.subr.mxu0 0.0
    %598 = vmatpush1.msra.mxu0 0.0
    %599 = vmatprep.mubr.f32.mxu0 0.0
    %600 = vmatmul.mubr.f32.gmra.mrb[0].mxu0 %v530
    %v601 = vpop.f32.mrb[0].mxu0
    %v602 = vadd.f32 0.0, %v601
    %v603 = vpop.f32.mrb[0].mxu0
    %604 = vdwg.mxu0
    %v606 = vsel %vm241, %v442, 0
    %v609 = vsel %vm295, %v448, 0
    %611 = vmatprep.subr.mxu0 0.0
    %612 = vmatpush1.msra.mxu0 %v445
    %613 = vmatprep.subr.mxu0 0.0
    %614 = vmatpush1.msra.mxu0 %v446
    %615 = vmatprep.subr.mxu0 0.0
    %616 = vmatpush1.msra.mxu0 %v447
    %617 = vmatprep.subr.mxu0 0.0
    %618 = vmatpush1.msra.mxu0 %v609
    %619 = vmatprep.subr.mxu0 0.0
    %620 = vmatpush1.msra.mxu0 0.0
    %621 = vmatprep.subr.mxu0 0.0
    %622 = vmatpush1.msra.mxu0 0.0
    %623 = vmatprep.subr.mxu0 0.0
    %624 = vmatpush1.msra.mxu0 0.0
    %625 = vmatprep.subr.mxu0 0.0
    %626 = vmatpush1.msra.mxu0 0.0
    %627 = vmatprep.subr.mxu0 0.0
    %628 = vmatpush1.msra.mxu0 0.0
    %629 = vmatprep.subr.mxu0 0.0
    %630 = vmatpush1.msra.mxu0 0.0
    %631 = vmatprep.subr.mxu0 0.0
    %632 = vmatpush1.msra.mxu0 0.0
    %633 = vmatprep.subr.mxu0 0.0
    %634 = vmatpush1.msra.mxu0 0.0
    %635 = vmatprep.subr.mxu0 0.0
    %636 = vmatpush1.msra.mxu0 0.0
    %637 = vmatprep.subr.mxu0 0.0
    %638 = vmatpush1.msra.mxu0 0.0
    %639 = vmatprep.subr.mxu0 0.0
    %640 = vmatpush1.msra.mxu0 0.0
    %641 = vmatprep.subr.mxu0 0.0
    %642 = vmatpush1.msra.mxu0 0.0
    %643 = vmatprep.subr.mxu0 0.0
    %644 = vmatpush1.msra.mxu0 0.0
    %645 = vmatprep.subr.mxu0 0.0
    %646 = vmatpush1.msra.mxu0 0.0
    %647 = vmatprep.subr.mxu0 0.0
    %648 = vmatpush1.msra.mxu0 0.0
    %649 = vmatprep.subr.mxu0 0.0
    %650 = vmatpush1.msra.mxu0 0.0
    %651 = vmatprep.subr.mxu0 0.0
    %652 = vmatpush1.msra.mxu0 0.0
    %653 = vmatprep.subr.mxu0 0.0
    %654 = vmatpush1.msra.mxu0 0.0
    %655 = vmatprep.subr.mxu0 0.0
    %656 = vmatpush1.msra.mxu0 0.0
    %657 = vmatprep.subr.mxu0 0.0
    %658 = vmatpush1.msra.mxu0 0.0
    %659 = vmatprep.subr.mxu0 0.0
    %660 = vmatpush1.msra.mxu0 0.0
    %661 = vmatprep.subr.mxu0 0.0
    %662 = vmatpush1.msra.mxu0 0.0
    %663 = vmatprep.subr.mxu0 0.0
    %664 = vmatpush1.msra.mxu0 0.0
    %665 = vmatprep.subr.mxu0 0.0
    %666 = vmatpush1.msra.mxu0 0.0
    %667 = vmatprep.subr.mxu0 0.0
    %668 = vmatpush1.msra.mxu0 0.0
    %669 = vmatprep.subr.mxu0 0.0
    %670 = vmatpush1.msra.mxu0 0.0
    %671 = vmatprep.subr.mxu0 0.0
    %672 = vmatpush1.msra.mxu0 0.0
    %673 = vmatprep.subr.mxu0 0.0
    %674 = vmatpush1.msra.mxu0 0.0
    %675 = vmatprep.mubr.f32.mxu0 0.0
    %676 = vmatmul.mubr.f32.gmra.mrb[0].mxu0 %v606
    %v677 = vpop.f32.mrb[0].mxu0
    %v678 = vadd.f32 %v602, %v677
    %v679 = vpop.f32.mrb[0].mxu0
    %680 = vdwg.mxu0
    %s681 = scalar_lea.vmem %s7, 4
    %v682 = vld [vmem:[%s681] sm:$0x3]
    %v684 = vsel %vm371, %v682, 0
    %686 = vmatprep.subr.mxu0 0.0
    %687 = vmatpush1.msra.mxu0 %v369
    %688 = vmatprep.subr.mxu0 0.0
    %689 = vmatpush1.msra.mxu0 0.0
    %690 = vmatprep.subr.mxu0 0.0
    %691 = vmatpush1.msra.mxu0 0.0
    %692 = vmatprep.subr.mxu0 0.0
    %693 = vmatpush1.msra.mxu0 0.0
    %694 = vmatprep.subr.mxu0 0.0
    %695 = vmatpush1.msra.mxu0 0.0
    %696 = vmatprep.subr.mxu0 0.0
    %697 = vmatpush1.msra.mxu0 0.0
    %698 = vmatprep.subr.mxu0 0.0
    %699 = vmatpush1.msra.mxu0 0.0
    %700 = vmatprep.subr.mxu0 0.0
    %701 = vmatpush1.msra.mxu0 0.0
    %702 = vmatprep.subr.mxu0 0.0
    %703 = vmatpush1.msra.mxu0 0.0
    %704 = vmatprep.subr.mxu0 0.0
    %705 = vmatpush1.msra.mxu0 0.0
    %706 = vmatprep.subr.mxu0 0.0
    %707 = vmatpush1.msra.mxu0 0.0
    %708 = vmatprep.subr.mxu0 0.0
    %709 = vmatpush1.msra.mxu0 0.0
    %710 = vmatprep.subr.mxu0 0.0
    %711 = vmatpush1.msra.mxu0 0.0
    %712 = vmatprep.subr.mxu0 0.0
    %713 = vmatpush1.msra.mxu0 0.0
    %714 = vmatprep.subr.mxu0 0.0
    %715 = vmatpush1.msra.mxu0 0.0
    %716 = vmatprep.subr.mxu0 0.0
    %717 = vmatpush1.msra.mxu0 0.0
    %718 = vmatprep.subr.mxu0 0.0
    %719 = vmatpush1.msra.mxu0 0.0
    %720 = vmatprep.subr.mxu0 0.0
    %721 = vmatpush1.msra.mxu0 0.0
    %722 = vmatprep.subr.mxu0 0.0
    %723 = vmatpush1.msra.mxu0 0.0
    %724 = vmatprep.subr.mxu0 0.0
    %725 = vmatpush1.msra.mxu0 0.0
    %726 = vmatprep.subr.mxu0 0.0
    %727 = vmatpush1.msra.mxu0 0.0
    %728 = vmatprep.subr.mxu0 0.0
    %729 = vmatpush1.msra.mxu0 0.0
    %730 = vmatprep.subr.mxu0 0.0
    %731 = vmatpush1.msra.mxu0 0.0
    %732 = vmatprep.subr.mxu0 0.0
    %733 = vmatpush1.msra.mxu0 0.0
    %734 = vmatprep.subr.mxu0 0.0
    %735 = vmatpush1.msra.mxu0 0.0
    %736 = vmatprep.subr.mxu0 0.0
    %737 = vmatpush1.msra.mxu0 0.0
    %738 = vmatprep.subr.mxu0 0.0
    %739 = vmatpush1.msra.mxu0 0.0
    %740 = vmatprep.subr.mxu0 0.0
    %741 = vmatpush1.msra.mxu0 0.0
    %742 = vmatprep.subr.mxu0 0.0
    %743 = vmatpush1.msra.mxu0 0.0
    %744 = vmatprep.subr.mxu0 0.0
    %745 = vmatpush1.msra.mxu0 0.0
    %746 = vmatprep.subr.mxu0 0.0
    %747 = vmatpush1.msra.mxu0 0.0
    %748 = vmatprep.subr.mxu0 0.0
    %749 = vmatpush1.msra.mxu0 0.0
    %750 = vmatprep.mubr.f32.mxu0 0.0
    %751 = vmatmul.mubr.f32.gmra.mrb[0].mxu0 %v684
    %v752 = vpop.f32.mrb[0].mxu0
    %v753 = vadd.f32 0.0, %v752
    %v754 = vpop.f32.mrb[0].mxu0
    %755 = vdwg.mxu0
    %s756 = scalar_lea.vmem %s8, 64
    %v757 = vld [vmem:[%s756] sm:$0xff]
    %v758 = vld [vmem:[%s756 + $0x8] sm:$0xff]
    %v759 = vld [vmem:[%s756 + $0x10] sm:$0xff]
    %v760 = vld [vmem:[%s756 + $0x18] sm:$0x3f]
    %v762 = vsel %vm241, %v753, 0
    %v765 = vsel %vm295, %v760, 0
    %767 = vmatprep.subr.mxu0 0.0
    %768 = vmatpush1.msra.mxu0 %v757
    %769 = vmatprep.subr.mxu0 0.0
    %770 = vmatpush1.msra.mxu0 %v758
    %771 = vmatprep.subr.mxu0 0.0
    %772 = vmatpush1.msra.mxu0 %v759
    %773 = vmatprep.subr.mxu0 0.0
    %774 = vmatpush1.msra.mxu0 %v765
    %775 = vmatprep.subr.mxu0 0.0
    %776 = vmatpush1.msra.mxu0 0.0
    %777 = vmatprep.subr.mxu0 0.0
    %778 = vmatpush1.msra.mxu0 0.0
    %779 = vmatprep.subr.mxu0 0.0
    %780 = vmatpush1.msra.mxu0 0.0
    %781 = vmatprep.subr.mxu0 0.0
    %782 = vmatpush1.msra.mxu0 0.0
    %783 = vmatprep.subr.mxu0 0.0
    %784 = vmatpush1.msra.mxu0 0.0
    %785 = vmatprep.subr.mxu0 0.0
    %786 = vmatpush1.msra.mxu0 0.0
    %787 = vmatprep.subr.mxu0 0.0
    %788 = vmatpush1.msra.mxu0 0.0
    %789 = vmatprep.subr.mxu0 0.0
    %790 = vmatpush1.msra.mxu0 0.0
    %791 = vmatprep.subr.mxu0 0.0
    %792 = vmatpush1.msra.mxu0 0.0
    %793 = vmatprep.subr.mxu0 0.0
    %794 = vmatpush1.msra.mxu0 0.0
    %795 = vmatprep.subr.mxu0 0.0
    %796 = vmatpush1.msra.mxu0 0.0
    %797 = vmatprep.subr.mxu0 0.0
    %798 = vmatpush1.msra.mxu0 0.0
    %799 = vmatprep.subr.mxu0 0.0
    %800 = vmatpush1.msra.mxu0 0.0
    %801 = vmatprep.subr.mxu0 0.0
    %802 = vmatpush1.msra.mxu0 0.0
    %803 = vmatprep.subr.mxu0 0.0
    %804 = vmatpush1.msra.mxu0 0.0
    %805 = vmatprep.subr.mxu0 0.0
    %806 = vmatpush1.msra.mxu0 0.0
    %807 = vmatprep.subr.mxu0 0.0
    %808 = vmatpush1.msra.mxu0 0.0
    %809 = vmatprep.subr.mxu0 0.0
    %810 = vmatpush1.msra.mxu0 0.0
    %811 = vmatprep.subr.mxu0 0.0
    %812 = vmatpush1.msra.mxu0 0.0
    %813 = vmatprep.subr.mxu0 0.0
    %814 = vmatpush1.msra.mxu0 0.0
    %815 = vmatprep.subr.mxu0 0.0
    %816 = vmatpush1.msra.mxu0 0.0
    %817 = vmatprep.subr.mxu0 0.0
    %818 = vmatpush1.msra.mxu0 0.0
    %819 = vmatprep.subr.mxu0 0.0
    %820 = vmatpush1.msra.mxu0 0.0
    %821 = vmatprep.subr.mxu0 0.0
    %822 = vmatpush1.msra.mxu0 0.0
    %823 = vmatprep.subr.mxu0 0.0
    %824 = vmatpush1.msra.mxu0 0.0
    %825 = vmatprep.subr.mxu0 0.0
    %826 = vmatpush1.msra.mxu0 0.0
    %827 = vmatprep.subr.mxu0 0.0
    %828 = vmatpush1.msra.mxu0 0.0
    %829 = vmatprep.subr.mxu0 0.0
    %830 = vmatpush1.msra.mxu0 0.0
    %831 = vmatprep.mubr.f32.mxu0 0.0
    %832 = vmatmul.mubr.f32.gmra.mrb[0].mxu0 %v762
    %v833 = vpop.f32.mrb[0].mxu0
    %v834 = vadd.f32 0.0, %v833
    %v835 = vpop.f32.mrb[0].mxu0
    %836 = vdwg.mxu0
    %v837 = vadd.f32 %v678, %v834
    %s838 = scalar_lea.vmem %s7, 6
    %v839 = vld [vmem:[%s838] sm:$0x3]
    %v841 = vsel %vm371, %v839, 0
    %843 = vmatprep.subr.mxu0 0.0
    %844 = vmatpush1.msra.mxu0 %v369
    %845 = vmatprep.subr.mxu0 0.0
    %846 = vmatpush1.msra.mxu0 0.0
    %847 = vmatprep.subr.mxu0 0.0
    %848 = vmatpush1.msra.mxu0 0.0
    %849 = vmatprep.subr.mxu0 0.0
    %850 = vmatpush1.msra.mxu0 0.0
    %851 = vmatprep.subr.mxu0 0.0
    %852 = vmatpush1.msra.mxu0 0.0
    %853 = vmatprep.subr.mxu0 0.0
    %854 = vmatpush1.msra.mxu0 0.0
    %855 = vmatprep.subr.mxu0 0.0
    %856 = vmatpush1.msra.mxu0 0.0
    %857 = vmatprep.subr.mxu0 0.0
    %858 = vmatpush1.msra.mxu0 0.0
    %859 = vmatprep.subr.mxu0 0.0
    %860 = vmatpush1.msra.mxu0 0.0
    %861 = vmatprep.subr.mxu0 0.0
    %862 = vmatpush1.msra.mxu0 0.0
    %863 = vmatprep.subr.mxu0 0.0
    %864 = vmatpush1.msra.mxu0 0.0
    %865 = vmatprep.subr.mxu0 0.0
    %866 = vmatpush1.msra.mxu0 0.0
    %867 = vmatprep.subr.mxu0 0.0
    %868 = vmatpush1.msra.mxu0 0.0
    %869 = vmatprep.subr.mxu0 0.0
    %870 = vmatpush1.msra.mxu0 0.0
    %871 = vmatprep.subr.mxu0 0.0
    %872 = vmatpush1.msra.mxu0 0.0
    %873 = vmatprep.subr.mxu0 0.0
    %874 = vmatpush1.msra.mxu0 0.0
    %875 = vmatprep.subr.mxu0 0.0
    %876 = vmatpush1.msra.mxu0 0.0
    %877 = vmatprep.subr.mxu0 0.0
    %878 = vmatpush1.msra.mxu0 0.0
    %879 = vmatprep.subr.mxu0 0.0
    %880 = vmatpush1.msra.mxu0 0.0
    %881 = vmatprep.subr.mxu0 0.0
    %882 = vmatpush1.msra.mxu0 0.0
    %883 = vmatprep.subr.mxu0 0.0
    %884 = vmatpush1.msra.mxu0 0.0
    %885 = vmatprep.subr.mxu0 0.0
    %886 = vmatpush1.msra.mxu0 0.0
    %887 = vmatprep.subr.mxu0 0.0
    %888 = vmatpush1.msra.mxu0 0.0
    %889 = vmatprep.subr.mxu0 0.0
    %890 = vmatpush1.msra.mxu0 0.0
    %891 = vmatprep.subr.mxu0 0.0
    %892 = vmatpush1.msra.mxu0 0.0
    %893 = vmatprep.subr.mxu0 0.0
    %894 = vmatpush1.msra.mxu0 0.0
    %895 = vmatprep.subr.mxu0 0.0
    %896 = vmatpush1.msra.mxu0 0.0
    %897 = vmatprep.subr.mxu0 0.0
    %898 = vmatpush1.msra.mxu0 0.0
    %899 = vmatprep.subr.mxu0 0.0
    %900 = vmatpush1.msra.mxu0 0.0
    %901 = vmatprep.subr.mxu0 0.0
    %902 = vmatpush1.msra.mxu0 0.0
    %903 = vmatprep.subr.mxu0 0.0
    %904 = vmatpush1.msra.mxu0 0.0
    %905 = vmatprep.subr.mxu0 0.0
    %906 = vmatpush1.msra.mxu0 0.0
    %907 = vmatprep.mubr.f32.mxu0 0.0
    %908 = vmatmul.mubr.f32.gmra.mrb[0].mxu0 %v841
    %v909 = vpop.f32.mrb[0].mxu0
    %v910 = vadd.f32 0.0, %v909
    %v911 = vpop.f32.mrb[0].mxu0
    %912 = vdwg.mxu0
    %s913 = scalar_lea.vmem %s8, 96
    %v914 = vld [vmem:[%s913] sm:$0xff]
    %v915 = vld [vmem:[%s913 + $0x8] sm:$0xff]
    %v916 = vld [vmem:[%s913 + $0x10] sm:$0xff]
    %v917 = vld [vmem:[%s913 + $0x18] sm:$0x3f]
    %v919 = vsel %vm241, %v910, 0
    %v922 = vsel %vm295, %v917, 0
    %924 = vmatprep.subr.mxu0 0.0
    %925 = vmatpush1.msra.mxu0 %v914
    %926 = vmatprep.subr.mxu0 0.0
    %927 = vmatpush1.msra.mxu0 %v915
    %928 = vmatprep.subr.mxu0 0.0
    %929 = vmatpush1.msra.mxu0 %v916
    %930 = vmatprep.subr.mxu0 0.0
    %931 = vmatpush1.msra.mxu0 %v922
    %932 = vmatprep.subr.mxu0 0.0
    %933 = vmatpush1.msra.mxu0 0.0
    %934 = vmatprep.subr.mxu0 0.0
    %935 = vmatpush1.msra.mxu0 0.0
    %936 = vmatprep.subr.mxu0 0.0
    %937 = vmatpush1.msra.mxu0 0.0
    %938 = vmatprep.subr.mxu0 0.0
    %939 = vmatpush1.msra.mxu0 0.0
    %940 = vmatprep.subr.mxu0 0.0
    %941 = vmatpush1.msra.mxu0 0.0
    %942 = vmatprep.subr.mxu0 0.0
    %943 = vmatpush1.msra.mxu0 0.0
    %944 = vmatprep.subr.mxu0 0.0
    %945 = vmatpush1.msra.mxu0 0.0
    %946 = vmatprep.subr.mxu0 0.0
    %947 = vmatpush1.msra.mxu0 0.0
    %948 = vmatprep.subr.mxu0 0.0
    %949 = vmatpush1.msra.mxu0 0.0
    %950 = vmatprep.subr.mxu0 0.0
    %951 = vmatpush1.msra.mxu0 0.0
    %952 = vmatprep.subr.mxu0 0.0
    %953 = vmatpush1.msra.mxu0 0.0
    %954 = vmatprep.subr.mxu0 0.0
    %955 = vmatpush1.msra.mxu0 0.0
    %956 = vmatprep.subr.mxu0 0.0
    %957 = vmatpush1.msra.mxu0 0.0
    %958 = vmatprep.subr.mxu0 0.0
    %959 = vmatpush1.msra.mxu0 0.0
    %960 = vmatprep.subr.mxu0 0.0
    %961 = vmatpush1.msra.mxu0 0.0
    %962 = vmatprep.subr.mxu0 0.0
    %963 = vmatpush1.msra.mxu0 0.0
    %964 = vmatprep.subr.mxu0 0.0
    %965 = vmatpush1.msra.mxu0 0.0
    %966 = vmatprep.subr.mxu0 0.0
    %967 = vmatpush1.msra.mxu0 0.0
    %968 = vmatprep.subr.mxu0 0.0
    %969 = vmatpush1.msra.mxu0 0.0
    %970 = vmatprep.subr.mxu0 0.0
    %971 = vmatpush1.msra.mxu0 0.0
    %972 = vmatprep.subr.mxu0 0.0
    %973 = vmatpush1.msra.mxu0 0.0
    %974 = vmatprep.subr.mxu0 0.0
    %975 = vmatpush1.msra.mxu0 0.0
    %976 = vmatprep.subr.mxu0 0.0
    %977 = vmatpush1.msra.mxu0 0.0
    %978 = vmatprep.subr.mxu0 0.0
    %979 = vmatpush1.msra.mxu0 0.0
    %980 = vmatprep.subr.mxu0 0.0
    %981 = vmatpush1.msra.mxu0 0.0
    %982 = vmatprep.subr.mxu0 0.0
    %983 = vmatpush1.msra.mxu0 0.0
    %984 = vmatprep.subr.mxu0 0.0
    %985 = vmatpush1.msra.mxu0 0.0
    %986 = vmatprep.subr.mxu0 0.0
    %987 = vmatpush1.msra.mxu0 0.0
    %988 = vmatprep.mubr.f32.mxu0 0.0
    %989 = vmatmul.mubr.f32.gmra.mrb[0].mxu0 %v919
    %v990 = vpop.f32.mrb[0].mxu0
    %v991 = vadd.f32 0.0, %v990
    %v992 = vpop.f32.mrb[0].mxu0
    %993 = vdwg.mxu0
    %v994 = vadd.f32 %v837, %v991
    %v995 = vld [vmem:[%s9] sm:$0x1]
    %v997 = vlaneseq
    %v998 = vshrl.u32 %v997, 7
    %v999 = vsub.s32 0, %v998
    %v1000 = vrot.slane %v995, %v999
    %v1002 = vadd.f32 %v994, %v1000
    %vm1003 = vcmask 189440
    %1004 = vst.msk [vmem:[#allocation2] sm:$0x3] %vm1003, %v1002
    // Predicated region
    $region42: #{tpu_custom_call.1} parent=1 // pred_check
      _
    $region43: #{tpu_custom_call.1} parent=1 // pred_check_branch
      %1006 = sbr.rel (0) target = $region45
    $region44: #{tpu_custom_call.1} parent=1 // pred_region
      %s1008 = ssub.s32 32, 32
      %1009 = vsyncadd [#allocation3], %s1008
      %s1011 = sshll.u32 [#allocation2], 4
      %s1012 = int_to_ptr.vmem [resolvable:$true] %s1011
      %1014 = dma.vmem_to_hbm [thread:$0]  %s1012, 32, %s10, [#allocation3]
    $region45: #{tpu_custom_call.1} parent=1 // pred_fallthru
      _
    // Predicated region
    $region46: #{tpu_custom_call.1} parent=1 // pred_check
      _
    $region47: #{tpu_custom_call.1} parent=1 // pred_check_branch
      %1016 = sbr.rel (0) target = $region49
    $region48: #{tpu_custom_call.1} parent=1 // pred_region
      %1017 = dma.done [#allocation3], 32
    $region49: #{tpu_custom_call.1} parent=1 // pred_fallthru
      _
    %1018 = vsyncpa [#allocation3], 1

</llo_original>
